<compile_context>
chip_gen: v7x
topology: tpu7x:2x2x1
jax: 0.10.0
libtpu: 0.0.40
codegen_flags: <defaults>
</compile_context>

<pallas_src>
import jax
import jax.numpy as jnp
from jax.experimental import pallas as pl
from jax.experimental.pallas import tpu as pltpu


def _uncertainty_kernel(q_ref, eps_ref, w_ref, b_ref,
                        qout_ref, mean_ref, var_ref):
    # In-kernel bf16 cast of the activation tile (hidden under DMA), then one
    # fused MXU matmul: (TB, D) @ (D, 2D) -> (TB, 2D) with f32 accumulation.
    q_bf = q_ref[...].astype(w_ref.dtype)
    fused = jnp.dot(q_bf, w_ref[...],
                    preferred_element_type=jnp.float32) + b_ref[...]

    d = mean_ref.shape[-1]
    mean = fused[:, :d]          # lane-aligned split (d is a multiple of 128)
    var = fused[:, d:]

    std = jnp.exp(0.5 * var)     # f32 elementwise; exp goes to the EUP slot
    qout_ref[...] = eps_ref[...] * std + mean
    mean_ref[...] = mean
    var_ref[...] = var


def prepare_uncertainty_params(w_means, b_means, w_logvar, b_logvar,
                               matmul_dtype=jnp.bfloat16):
    """One-time parameter prep (do NOT call per forward): transpose PyTorch
    (out, in) weights, fuse the two linears into a single (D, 2D) weight and
    (1, 2D) bias, and cast the matmul weight to bf16."""
    d = w_means.shape[0]
    w_cat = jnp.concatenate([w_means.T, w_logvar.T], axis=1).astype(matmul_dtype)
    b_cat = jnp.concatenate([b_means, b_logvar]).reshape(1, 2 * d).astype(jnp.float32)
    return w_cat, b_cat


def _pick_block_b(B, block_b):
    if block_b is None:
        # Default: aim for >= 2 grid steps (keeps both v7x TensorCores busy under
        # ("parallel",)); cap tile height at 1024 rows.  On single-core v5e/v6e
        # pass block_b=B explicitly to collapse to one grid step if desired.
        block_b = min(1024, max(8, pl.cdiv(B, 2)))
        block_b = pl.cdiv(block_b, 8) * 8
    return min(block_b, B)


def _vmem_bytes_estimate(tb, D):
    # Double-buffered pipelined streams (q, eps in; q', mean, var out), all f32.
    streams = 2 * (5 * tb * D * 4)
    # Resident fused weight (bf16) + bias (f32).
    resident = D * (2 * D) * 2 + (2 * D) * 4
    # f32 working set inside the body (fused / std / products), generous.
    temps = 4 * tb * (2 * D) * 4
    return streams + resident + temps


def uncertainty_module_forward(q, eps, w_cat, b_cat, *, block_b=None):
    """q, eps: (B, D) float32; w_cat: (D, 2D) bf16; b_cat: (1, 2D) f32."""
    B, D = q.shape
    assert eps.shape == (B, D), "eps must match q"
    assert w_cat.shape == (D, 2 * D), "w_cat must be the fused (D, 2D) weight"
    assert b_cat.shape == (1, 2 * D), "b_cat must be the fused (1, 2D) bias"

    tb = _pick_block_b(B, block_b)
    grid = (pl.cdiv(B, tb),)                 # no jnp.pad: Pallas handles ragged B

    # VMEM budget check (v7x: 64 MiB physical is the binding constraint).
    vmem_needed = _vmem_bytes_estimate(tb, D)
    assert vmem_needed < 60 * 1024 * 1024, (
        f"tile too large for v7x VMEM: ~{vmem_needed >> 20} MiB; lower block_b "
        "or tile the fused weight over K")
    vmem_limit = min(64 * 1024 * 1024, max(16 * 1024 * 1024, vmem_needed * 2))

    tile = lambda i: (i, 0)                  # batch-tiled arrays
    const = lambda i: (0, 0)                 # weights/bias stay VMEM-resident

    out_shapes = (
        jax.ShapeDtypeStruct((B, D), jnp.float32),   # q'
        jax.ShapeDtypeStruct((B, D), jnp.float32),   # mean
        jax.ShapeDtypeStruct((B, D), jnp.float32),   # var
    )

    cost = pl.CostEstimate(
        flops=2 * B * D * (2 * D),
        transcendentals=B * D,
        bytes_accessed=(2 * B * D * 4            # q + eps reads
                        + D * (2 * D) * 2        # fused weight
                        + (2 * D) * 4            # fused bias
                        + 3 * B * D * 4),        # q', mean, var writes
    )

    q_out, mean, var = pl.pallas_call(
        _uncertainty_kernel,
        out_shape=out_shapes,
        grid_spec=pltpu.PrefetchScalarGridSpec(
            num_scalar_prefetch=0,
            grid=grid,
            in_specs=[
                pl.BlockSpec((tb, D), tile),         # q tile (f32, cast in-kernel)
                pl.BlockSpec((tb, D), tile),         # eps tile
                pl.BlockSpec((D, 2 * D), const),     # fused weights (resident)
                pl.BlockSpec((1, 2 * D), const),     # fused bias (resident)
            ],
            out_specs=[
                pl.BlockSpec((tb, D), tile),
                pl.BlockSpec((tb, D), tile),
                pl.BlockSpec((tb, D), tile),
            ],
        ),
        compiler_params=pltpu.CompilerParams(
            dimension_semantics=("parallel",),       # megacore-shardable on v7x
            vmem_limit_bytes=vmem_limit,
        ),
        cost_estimate=cost,
    )(q, eps, w_cat, b_cat)

    return q_out, mean, var


if __name__ == "__main__":
    B, D = 512, 128   # in_dim = 128 (lane-dense outputs), batch tiled -> grid=(2,)

    key = jax.random.PRNGKey(0)
    k_q, k_wm, k_bm, k_wv, k_bv, k_eps = jax.random.split(key, 6)

    # Deterministic synthetic parameters (PyTorch nn.Linear-like uniform init).
    bound = 1.0 / (D ** 0.5)
    q = jax.random.normal(k_q, (B, D), dtype=jnp.float32)
    w_means = jax.random.uniform(k_wm, (D, D), jnp.float32, -bound, bound)
    b_means = jax.random.uniform(k_bm, (D,), jnp.float32, -bound, bound)
    w_logvar = jax.random.uniform(k_wv, (D, D), jnp.float32, -bound, bound)
    b_logvar = jax.random.uniform(k_bv, (D,), jnp.float32, -bound, bound)
    eps = jax.random.normal(k_eps, (B, D), dtype=jnp.float32)   # torch.randn equiv

    # Parameter prep happens once, outside the forward.
    w_cat, b_cat = prepare_uncertainty_params(w_means, b_means, w_logvar, b_logvar)

    q_out, mean, var = uncertainty_module_forward(q, eps, w_cat, b_cat)
    jax.block_until_ready((q_out, mean, var))

    # Pure-JAX reference with matching bf16 matmul operands / f32 accumulation.
    q_bf = q.astype(jnp.bfloat16)
    mean_ref = jnp.dot(q_bf, w_means.T.astype(jnp.bfloat16),
                       preferred_element_type=jnp.float32) + b_means
    var_ref = jnp.dot(q_bf, w_logvar.T.astype(jnp.bfloat16),
                      preferred_element_type=jnp.float32) + b_logvar
    q_ref = eps * jnp.exp(0.5 * var_ref) + mean_ref

    assert jnp.allclose(mean, mean_ref, atol=2e-3, rtol=2e-3), "mean mismatch"
    assert jnp.allclose(var, var_ref, atol=2e-3, rtol=2e-3), "var mismatch"
    assert jnp.allclose(q_out, q_ref, atol=5e-3, rtol=5e-3), "q' mismatch"
    assert bool(jnp.all(jnp.isfinite(q_out)))

    print("KERNEL_OK")
</pallas_src>

<mosaic_0001>
module attributes {stable_mosaic.version = 11 : i64} {
  func.func @_uncertainty_kernel(%arg0: i32, %arg1: memref<256x128xf32, #tpu.memory_space<vmem>>, %arg2: memref<256x128xf32, #tpu.memory_space<vmem>>, %arg3: memref<128x256xbf16, #tpu.memory_space<vmem>>, %arg4: memref<1x256xf32, #tpu.memory_space<vmem>>, %arg5: memref<256x128xf32, #tpu.memory_space<vmem>>, %arg6: memref<256x128xf32, #tpu.memory_space<vmem>>, %arg7: memref<256x128xf32, #tpu.memory_space<vmem>>) attributes {dimension_semantics = [#tpu.dimension_semantics<parallel>], iteration_bounds = array<i64: 2>, scalar_prefetch = 0 : i64, scratch_operands = 0 : i64, tpu.core_type = #tpu.core_type<tc>, window_params = [{transform_indices = @transform_0, window_bounds = array<i64: 256, 128>}, {transform_indices = @transform_1, window_bounds = array<i64: 256, 128>}, {pipeline_mode = #tpu.pipeline_mode<synchronous>, transform_indices = @transform_2, window_bounds = array<i64: 128, 256>}, {pipeline_mode = #tpu.pipeline_mode<synchronous>, transform_indices = @transform_3, window_bounds = array<i64: 1, 256>}, {transform_indices = @transform_4, window_bounds = array<i64: 256, 128>}, {transform_indices = @transform_5, window_bounds = array<i64: 256, 128>}, {transform_indices = @transform_6, window_bounds = array<i64: 256, 128>}]} {
    %c0 = arith.constant 0 : index
    %c0_0 = arith.constant 0 : index
    %0 = vector.load %arg1[%c0, %c0_0] : memref<256x128xf32, #tpu.memory_space<vmem>>, vector<256x128xf32>
    %1 = arith.truncf %0 : vector<256x128xf32> to vector<256x128xbf16>
    %c0_1 = arith.constant 0 : index
    %c0_2 = arith.constant 0 : index
    %2 = vector.load %arg3[%c0_1, %c0_2] : memref<128x256xbf16, #tpu.memory_space<vmem>>, vector<128x256xbf16>
    %cst = arith.constant dense<0.000000e+00> : vector<256x256xf32>
    %3 = tpu.matmul %1, %2, %cst {dimension_numbers = #tpu.dot_dimension_numbers<[1], [0], [0], [1], [0, 0, 1, 1], [], []>} : vector<256x128xbf16>, vector<128x256xbf16>, vector<256x256xf32> -> vector<256x256xf32>
    %c0_3 = arith.constant 0 : index
    %c0_4 = arith.constant 0 : index
    %4 = vector.load %arg4[%c0_3, %c0_4] : memref<1x256xf32, #tpu.memory_space<vmem>>, vector<1x256xf32>
    %5 = vector.broadcast %4 : vector<1x256xf32> to vector<256x256xf32>
    %6 = arith.addf %3, %5 : vector<256x256xf32>
    %7 = vector.extract_strided_slice %6 {offsets = [0, 0], sizes = [256, 128], strides = [1, 1]} : vector<256x256xf32> to vector<256x128xf32>
    %8 = vector.extract_strided_slice %6 {offsets = [0, 128], sizes = [256, 128], strides = [1, 1]} : vector<256x256xf32> to vector<256x128xf32>
    %cst_5 = arith.constant 5.000000e-01 : f32
    %9 = vector.broadcast %cst_5 : f32 to vector<256x128xf32>
    %10 = arith.mulf %9, %8 : vector<256x128xf32>
    %11 = math.exp %10 : vector<256x128xf32>
    %c0_6 = arith.constant 0 : index
    %c0_7 = arith.constant 0 : index
    %12 = vector.load %arg2[%c0_6, %c0_7] : memref<256x128xf32, #tpu.memory_space<vmem>>, vector<256x128xf32>
    %13 = arith.mulf %12, %11 : vector<256x128xf32>
    %14 = arith.addf %13, %7 : vector<256x128xf32>
    %c0_8 = arith.constant 0 : index
    %c0_9 = arith.constant 0 : index
    %15 = vector.load %arg5[%c0_8, %c0_9] : memref<256x128xf32, #tpu.memory_space<vmem>>, vector<256x128xf32>
    tpu.vector_store %arg5[%c0_8, %c0_9], %14 {strides = array<i32>} : memref<256x128xf32, #tpu.memory_space<vmem>>, vector<256x128xf32>,
    %c0_10 = arith.constant 0 : index
    %c0_11 = arith.constant 0 : index
    %16 = vector.load %arg6[%c0_10, %c0_11] : memref<256x128xf32, #tpu.memory_space<vmem>>, vector<256x128xf32>
    tpu.vector_store %arg6[%c0_10, %c0_11], %7 {strides = array<i32>} : memref<256x128xf32, #tpu.memory_space<vmem>>, vector<256x128xf32>,
    %c0_12 = arith.constant 0 : index
    %c0_13 = arith.constant 0 : index
    %17 = vector.load %arg7[%c0_12, %c0_13] : memref<256x128xf32, #tpu.memory_space<vmem>>, vector<256x128xf32>
    tpu.vector_store %arg7[%c0_12, %c0_13], %8 {strides = array<i32>} : memref<256x128xf32, #tpu.memory_space<vmem>>, vector<256x128xf32>,
    return
  }
  func.func @transform_0(%arg0: i32) -> (i32, i32) {
    %c0_i32 = arith.constant 0 : i32
    %c0_i32_0 = arith.constant 0 : i32
    return %arg0, %c0_i32 : i32, i32
  }
  func.func @transform_1(%arg0: i32) -> (i32, i32) {
    %c0_i32 = arith.constant 0 : i32
    %c0_i32_0 = arith.constant 0 : i32
    return %arg0, %c0_i32 : i32, i32
  }
  func.func @transform_2(%arg0: i32) -> (i32, i32) {
    %c0_i32 = arith.constant 0 : i32
    %c0_i32_0 = arith.constant 0 : i32
    %c0_i32_1 = arith.constant 0 : i32
    return %c0_i32, %c0_i32_0 : i32, i32
  }
  func.func @transform_3(%arg0: i32) -> (i32, i32) {
    %c0_i32 = arith.constant 0 : i32
    %c0_i32_0 = arith.constant 0 : i32
    %c0_i32_1 = arith.constant 0 : i32
    return %c0_i32, %c0_i32_0 : i32, i32
  }
  func.func @transform_4(%arg0: i32) -> (i32, i32) {
    %c0_i32 = arith.constant 0 : i32
    %c0_i32_0 = arith.constant 0 : i32
    return %arg0, %c0_i32 : i32, i32
  }
  func.func @transform_5(%arg0: i32) -> (i32, i32) {
    %c0_i32 = arith.constant 0 : i32
    %c0_i32_0 = arith.constant 0 : i32
    return %arg0, %c0_i32 : i32, i32
  }
  func.func @transform_6(%arg0: i32) -> (i32, i32) {
    %c0_i32 = arith.constant 0 : i32
    %c0_i32_0 = arith.constant 0 : i32
    return %arg0, %c0_i32 : i32, i32
  }
}

</mosaic_0001>

<llo_original>
// kernel: tpu_custom_call.1
$region0: #{tpu_custom_call.1}
  #allocation0 [shape = 'u32[]', space=smem, size = 0x4, offset = 0x4, fixed_abs, tag = 'smem constant byte address 0x4 - core index']
  #allocation1 [shape = 'u32[144,128]{1,0:T(1,128)}', space=vmem, size = 0x12000, scoped, tag = 'internal scratch']
  %s0 = inlined_call_operand.hbm [shape: f32[512,128], index: 0, kind: input, shape index: {}]
  %s1 = inlined_call_operand.hbm [shape: f32[512,128], index: 1, kind: input, shape index: {}]
  %s2 = inlined_call_operand.hbm [shape: bf16[128,256], index: 2, kind: input, shape index: {}]
  %s3 = inlined_call_operand.vmem [shape: f32[1,256], index: 3, kind: input, shape index: {}]
  %s4 = inlined_call_operand.hbm [shape: f32[512,128], index: 4, kind: output, shape index: {0}]
  %s5 = inlined_call_operand.hbm [shape: f32[512,128], index: 5, kind: output, shape index: {1}]
  %s6 = inlined_call_operand.hbm [shape: f32[512,128], index: 6, kind: output, shape index: {2}]
  %7 = xla_tuple %s4, %s5, %s6
  %s8 = sld [smem:[#allocation0]]
  $region77: #{tpu_custom_call.1} parent=0
    _
  %s10 = ssub.s32 1, %s8
  %s11 = scalar_select 0, %s10, %s8
  $region1: #{tpu_custom_call.1} parent=0
    #allocation2 [shape = 'u8[262144]{0}', space=vmem, size = 0x40000, scoped, tag = 'input window, operand 0']
    #allocation3 [shape = 's32[2]{0}', space=sflag, size = 0x8, scoped, tag = 'scoped memory for tpu_custom_call.1']
    #allocation4 [shape = 's32[2]{0}', space=sflag, size = 0x8, scoped, tag = 'scoped memory for tpu_custom_call.1']
    #allocation5 [shape = 'u8[262144]{0}', space=vmem, size = 0x40000, scoped, tag = 'input window, operand 1']
    #allocation6 [shape = 's32[2]{0}', space=sflag, size = 0x8, scoped, tag = 'scoped memory for tpu_custom_call.1']
    #allocation7 [shape = 'u8[65536]{0}', space=vmem, size = 0x10000, scoped, tag = 'input window, operand 2, single buffered']
    #allocation8 [shape = 'u8[262144]{0}', space=vmem, size = 0x40000, scoped, tag = 'output window, operand 0']
    #allocation9 [shape = 'u8[262144]{0}', space=vmem, size = 0x40000, scoped, tag = 'output window, operand 1']
    #allocation10 [shape = 's32[2]{0}', space=sflag, size = 0x8, scoped, tag = 'scoped memory for tpu_custom_call.1']
    #allocation11 [shape = 'u8[262144]{0}', space=vmem, size = 0x40000, scoped, tag = 'output window, operand 2']
    %12 = vsyncpa [#allocation3], 0
    %s13 = scalar_lea.sflag [#allocation3], 1
    %14 = vsyncpa %s13, 0
    %15 = vsyncpa [#allocation6], 0
    %s16 = scalar_lea.sflag [#allocation6], 1
    %17 = vsyncpa %s16, 0
    %18 = vsyncpa [#allocation4], 0
    %s19 = scalar_lea.sflag [#allocation4], 1
    %20 = vsyncpa %s19, 0
    %21 = vsyncpa [#allocation10], 0
    %s22 = scalar_lea.sflag [#allocation10], 1
    %23 = vsyncpa %s22, 0
    loop: start=0, step=1, limit=4
    $region2: #{tpu_custom_call.1} parent=1 // loop_pre_header
      _
    $region3: #{tpu_custom_call.1} parent=1 // loop_header
      %s25 = sphi 0, %s29
      %p26 = scmp.ge.s32.totalorder %s25, 4
      %s35 = sphi 0, %s37
      %s38 = sphi 0, %s35
      %s39 = sphi 0, %s38
      %s55 = sphi 0, %s39
      %s61 = sphi 0, %s63
      %s64 = sphi 0, %s61
      %s65 = sphi 0, %s64
      %s81 = sphi 0, %s65
      %s85 = sphi 0, %s85
      %s87 = sphi 0, %s85
      %s88 = sphi 0, %s87
      %s102 = sphi 0, %s88
      %s106 = sphi 0, %s106
      %s108 = sphi 0, %s106
      %s109 = sphi 0, %s108
      %s123 = sphi 0, %s109
      %s129 = sphi 0, %s131
      %s132 = sphi 0, %s129
      %s133 = sphi 0, %s132
      %s149 = sphi 0, %s133
      %s155 = sphi 0, %s157
      %s158 = sphi 0, %s155
      %s159 = sphi 0, %s158
      %s175 = sphi 0, %s159
      %s181 = sphi 0, %s183
      %s184 = sphi 0, %s181
      %s185 = sphi 0, %s184
      %s201 = sphi 0, %s185
    $region4: #{tpu_custom_call.1} parent=1 // loop_header_branch
      %28 = sbr.rel (%p26) target = $region8
    $region5: #{tpu_custom_call.1} parent=1 // loop_body
      %s30 = ssub.s32 %s25, 1
      %s31 = ssub.s32 %s25, 2
      %s32 = sadd.s32 %s25, 1
      %s33 = ssub.s32 %s25, %s32
      %p34 = scmp.eq.s32.totalorder %s33, 0
      %s36 = sadd.s32 %s35, 1
      %s37 = scalar_select %p34, %s35, %s36
      %p40 = pneg %p34
      %p41 = scmp.eq.s32.totalorder %s25, 1
      %p42 = por %p40, %p41
      %p43 = scmp.ne.s32.totalorder %s35, %s38
      %p44 = scmp.eq.s32.totalorder %s25, 0
      %p45 = por %p43, %p44
      %p46 = scmp.ne.s32.totalorder %s35, %s38
      %p47 = scmp.eq.s32.totalorder %s30, 1
      %p48 = por %p46, %p47
      %p49 = scmp.ne.s32.totalorder %s38, %s39
      %p50 = scmp.eq.s32.totalorder %s30, 0
      %p51 = por %p49, %p50
      %p52 = scmp.ne.s32.totalorder %s38, %s39
      %p53 = scmp.eq.s32.totalorder %s31, 1
      %p54 = por %p52, %p53
      %p56 = scmp.ne.s32.totalorder %s39, %s55
      %p57 = scmp.eq.s32.totalorder %s31, 0
      %p58 = por %p56, %p57
      %s59 = ssub.s32 %s25, %s32
      %p60 = scmp.eq.s32.totalorder %s59, 0
      %s62 = sadd.s32 %s61, 1
      %s63 = scalar_select %p60, %s61, %s62
      %p66 = pneg %p60
      %p67 = scmp.eq.s32.totalorder %s25, 1
      %p68 = por %p66, %p67
      %p69 = scmp.ne.s32.totalorder %s61, %s64
      %p70 = scmp.eq.s32.totalorder %s25, 0
      %p71 = por %p69, %p70
      %p72 = scmp.ne.s32.totalorder %s61, %s64
      %p73 = scmp.eq.s32.totalorder %s30, 1
      %p74 = por %p72, %p73
      %p75 = scmp.ne.s32.totalorder %s64, %s65
      %p76 = scmp.eq.s32.totalorder %s30, 0
      %p77 = por %p75, %p76
      %p78 = scmp.ne.s32.totalorder %s64, %s65
      %p79 = scmp.eq.s32.totalorder %s31, 1
      %p80 = por %p78, %p79
      %p82 = scmp.ne.s32.totalorder %s65, %s81
      %p83 = scmp.eq.s32.totalorder %s31, 0
      %p84 = por %p82, %p83
      %s86 = sadd.s32 %s85, 1
      %p89 = scmp.eq.s32.totalorder %s25, 1
      %p90 = scmp.ne.s32.totalorder %s85, %s87
      %p91 = scmp.eq.s32.totalorder %s25, 0
      %p92 = por %p90, %p91
      %p93 = scmp.ne.s32.totalorder %s85, %s87
      %p94 = scmp.eq.s32.totalorder %s30, 1
      %p95 = por %p93, %p94
      %p96 = scmp.ne.s32.totalorder %s87, %s88
      %p97 = scmp.eq.s32.totalorder %s30, 0
      %p98 = por %p96, %p97
      %p99 = scmp.ne.s32.totalorder %s87, %s88
      %p100 = scmp.eq.s32.totalorder %s31, 1
      %p101 = por %p99, %p100
      %p103 = scmp.ne.s32.totalorder %s88, %s102
      %p104 = scmp.eq.s32.totalorder %s31, 0
      %p105 = por %p103, %p104
      %s107 = sadd.s32 %s106, 1
      %p110 = scmp.eq.s32.totalorder %s25, 1
      %p111 = scmp.ne.s32.totalorder %s106, %s108
      %p112 = scmp.eq.s32.totalorder %s25, 0
      %p113 = por %p111, %p112
      %p114 = scmp.ne.s32.totalorder %s106, %s108
      %p115 = scmp.eq.s32.totalorder %s30, 1
      %p116 = por %p114, %p115
      %p117 = scmp.ne.s32.totalorder %s108, %s109
      %p118 = scmp.eq.s32.totalorder %s30, 0
      %p119 = por %p117, %p118
      %p120 = scmp.ne.s32.totalorder %s108, %s109
      %p121 = scmp.eq.s32.totalorder %s31, 1
      %p122 = por %p120, %p121
      %p124 = scmp.ne.s32.totalorder %s109, %s123
      %p125 = scmp.eq.s32.totalorder %s31, 0
      %p126 = por %p124, %p125
      %s127 = ssub.s32 %s25, %s32
      %p128 = scmp.eq.s32.totalorder %s127, 0
      %s130 = sadd.s32 %s129, 1
      %s131 = scalar_select %p128, %s129, %s130
      %p134 = pneg %p128
      %p135 = scmp.eq.s32.totalorder %s25, 1
      %p136 = por %p134, %p135
      %p137 = scmp.ne.s32.totalorder %s129, %s132
      %p138 = scmp.eq.s32.totalorder %s25, 0
      %p139 = por %p137, %p138
      %p140 = scmp.ne.s32.totalorder %s129, %s132
      %p141 = scmp.eq.s32.totalorder %s30, 1
      %p142 = por %p140, %p141
      %p143 = scmp.ne.s32.totalorder %s132, %s133
      %p144 = scmp.eq.s32.totalorder %s30, 0
      %p145 = por %p143, %p144
      %p146 = scmp.ne.s32.totalorder %s132, %s133
      %p147 = scmp.eq.s32.totalorder %s31, 1
      %p148 = por %p146, %p147
      %p150 = scmp.ne.s32.totalorder %s133, %s149
      %p151 = scmp.eq.s32.totalorder %s31, 0
      %p152 = por %p150, %p151
      %s153 = ssub.s32 %s25, %s32
      %p154 = scmp.eq.s32.totalorder %s153, 0
      %s156 = sadd.s32 %s155, 1
      %s157 = scalar_select %p154, %s155, %s156
      %p160 = pneg %p154
      %p161 = scmp.eq.s32.totalorder %s25, 1
      %p162 = por %p160, %p161
      %p163 = scmp.ne.s32.totalorder %s155, %s158
      %p164 = scmp.eq.s32.totalorder %s25, 0
      %p165 = por %p163, %p164
      %p166 = scmp.ne.s32.totalorder %s155, %s158
      %p167 = scmp.eq.s32.totalorder %s30, 1
      %p168 = por %p166, %p167
      %p169 = scmp.ne.s32.totalorder %s158, %s159
      %p170 = scmp.eq.s32.totalorder %s30, 0
      %p171 = por %p169, %p170
      %p172 = scmp.ne.s32.totalorder %s158, %s159
      %p173 = scmp.eq.s32.totalorder %s31, 1
      %p174 = por %p172, %p173
      %p176 = scmp.ne.s32.totalorder %s159, %s175
      %p177 = scmp.eq.s32.totalorder %s31, 0
      %p178 = por %p176, %p177
      %s179 = ssub.s32 %s25, %s32
      %p180 = scmp.eq.s32.totalorder %s179, 0
      %s182 = sadd.s32 %s181, 1
      %s183 = scalar_select %p180, %s181, %s182
      %p186 = pneg %p180
      %p187 = scmp.eq.s32.totalorder %s25, 1
      %p188 = por %p186, %p187
      %p189 = scmp.ne.s32.totalorder %s181, %s184
      %p190 = scmp.eq.s32.totalorder %s25, 0
      %p191 = por %p189, %p190
      %p192 = scmp.ne.s32.totalorder %s181, %s184
      %p193 = scmp.eq.s32.totalorder %s30, 1
      %p194 = por %p192, %p193
      %p195 = scmp.ne.s32.totalorder %s184, %s185
      %p196 = scmp.eq.s32.totalorder %s30, 0
      %p197 = por %p195, %p196
      %p198 = scmp.ne.s32.totalorder %s184, %s185
      %p199 = scmp.eq.s32.totalorder %s31, 1
      %p200 = por %p198, %p199
      %p202 = scmp.ne.s32.totalorder %s185, %s201
      %p203 = scmp.eq.s32.totalorder %s31, 0
      %p204 = por %p202, %p203
      %p205 = scmp.le.s32.totalorder 1, %s25
      %p206 = scmp.lt.s32.totalorder %s25, 3
      %p207 = pnand %p205, %p206
      %p208 = pneg %p207
      // Predicated region
      $region9: #{tpu_custom_call.1} parent=5 // pred_check
        _
      $region10: #{tpu_custom_call.1} parent=5 // pred_check_branch
        %210 = sbr.rel (%p207) target = $region12
      $region11: #{tpu_custom_call.1} parent=5 // pred_region
        %s211 = ssub.s32 %s25, 1
        // Predicated region
        $region13: #{tpu_custom_call.1} parent=11 // pred_check
          %p212 = pneg %p98
        $region14: #{tpu_custom_call.1} parent=11 // pred_check_branch
          %214 = sbr.rel (%p212) target = $region16
        $region15: #{tpu_custom_call.1} parent=11 // pred_region
          %s216 = ssub.s32 2048, 2048
          %217 = vsyncadd [#allocation6], %s216
          %s218 = sshll.u32 [#allocation7], 4
          %s219 = int_to_ptr.vmem [resolvable:$true] %s218
          %224 = dma.hbm_to_vmem [thread:$0]  %s2, 2048, %s219, [#allocation6], 128, 128, 8
        $region16: #{tpu_custom_call.1} parent=11 // pred_fallthru
          _
        // Predicated region
        $region17: #{tpu_custom_call.1} parent=11 // pred_check
          %p225 = pneg %p119
        $region18: #{tpu_custom_call.1} parent=11 // pred_check_branch
          %227 = sbr.rel (%p225) target = $region20
        $region19: #{tpu_custom_call.1} parent=11 // pred_region
          _
        $region20: #{tpu_custom_call.1} parent=11 // pred_fallthru
          _
      $region12: #{tpu_custom_call.1} parent=5 // pred_fallthru
        _
      %p228 = scmp.lt.s32.totalorder %s25, 2
      // Predicated region
      $region21: #{tpu_custom_call.1} parent=5 // pred_check
        %p229 = pneg %p228
      $region22: #{tpu_custom_call.1} parent=5 // pred_check_branch
        %231 = sbr.rel (%p229) target = $region24
      $region23: #{tpu_custom_call.1} parent=5 // pred_region
        // Predicated region
        $region25: #{tpu_custom_call.1} parent=23 // pred_check
          %p232 = pneg %p45
        $region26: #{tpu_custom_call.1} parent=23 // pred_check_branch
          %234 = sbr.rel (%p232) target = $region28
        $region27: #{tpu_custom_call.1} parent=23 // pred_region
          %s235 = sand.u32 %s35, 1
          %s236 = scalar_lea.sflag [#allocation3], %s235
          %s237 = sand.u32 %s35, 1
          %s238 = smul.addr %s237, 256
          %s239 = scalar_lea.vmem [#allocation2], %s238
          %s240 = smul.u32 32, %s25
          %s242 = ssub.s32 4096, 4096
          %243 = vsyncadd %s236, %s242
          %s244 = smul.addr %s240, 128
          %s245 = scalar_lea.hbm %s0, %s244
          %s246 = sshll.u32 %s239, 4
          %s247 = int_to_ptr.vmem [resolvable:$true] %s246
          %252 = dma.hbm_to_vmem [thread:$0]  %s245, 4096, %s247, %s236, 128, 128, 8
        $region28: #{tpu_custom_call.1} parent=23 // pred_fallthru
          _
        // Predicated region
        $region29: #{tpu_custom_call.1} parent=23 // pred_check
          %p253 = pneg %p71
        $region30: #{tpu_custom_call.1} parent=23 // pred_check_branch
          %255 = sbr.rel (%p253) target = $region32
        $region31: #{tpu_custom_call.1} parent=23 // pred_region
          %s256 = sand.u32 %s25, 1
          %s257 = scalar_lea.sflag [#allocation6], %s256
          %s258 = sand.u32 %s61, 1
          %s259 = smul.addr %s258, 256
          %s260 = scalar_lea.vmem [#allocation5], %s259
          %s261 = smul.u32 32, %s25
          %s263 = ssub.s32 4096, 4096
          %264 = vsyncadd %s257, %s263
          %s265 = smul.addr %s261, 128
          %s266 = scalar_lea.hbm %s1, %s265
          %s267 = sshll.u32 %s260, 4
          %s268 = int_to_ptr.vmem [resolvable:$true] %s267
          %273 = dma.hbm_to_vmem [thread:$0]  %s266, 4096, %s268, %s257, 128, 128, 8
        $region32: #{tpu_custom_call.1} parent=23 // pred_fallthru
          _
      $region24: #{tpu_custom_call.1} parent=5 // pred_fallthru
        _
      %p274 = scmp.le.s32.totalorder 1, %s25
      %p275 = scmp.lt.s32.totalorder %s25, 3
      %p276 = pnand %p274, %p275
      %p277 = pneg %p276
      // Predicated region
      $region33: #{tpu_custom_call.1} parent=5 // pred_check
        _
      $region34: #{tpu_custom_call.1} parent=5 // pred_check_branch
        %279 = sbr.rel (%p276) target = $region36
      $region35: #{tpu_custom_call.1} parent=5 // pred_region
        %s280 = ssub.s32 %s25, 1
        %s281 = sand.u32 %s38, 1
        %s282 = scalar_lea.sflag [#allocation3], %s281
        %s283 = sand.u32 %s38, 1
        %s284 = smul.addr %s283, 256
        %s285 = scalar_lea.vmem [#allocation2], %s284
        // Predicated region
        $region37: #{tpu_custom_call.1} parent=35 // pred_check
          %p286 = pneg %p51
        $region38: #{tpu_custom_call.1} parent=35 // pred_check_branch
          %288 = sbr.rel (%p286) target = $region40
        $region39: #{tpu_custom_call.1} parent=35 // pred_region
          %289 = dma.done %s282, 4096
        $region40: #{tpu_custom_call.1} parent=35 // pred_fallthru
          _
        %s290 = sand.u32 %s30, 1
        %s291 = scalar_lea.sflag [#allocation6], %s290
        %s292 = sand.u32 %s64, 1
        %s293 = smul.addr %s292, 256
        %s294 = scalar_lea.vmem [#allocation5], %s293
        // Predicated region
        $region41: #{tpu_custom_call.1} parent=35 // pred_check
          %p295 = pneg %p77
        $region42: #{tpu_custom_call.1} parent=35 // pred_check_branch
          %297 = sbr.rel (%p295) target = $region44
        $region43: #{tpu_custom_call.1} parent=35 // pred_region
          %298 = dma.done %s291, 4096
        $region44: #{tpu_custom_call.1} parent=35 // pred_fallthru
          _
        // Predicated region
        $region45: #{tpu_custom_call.1} parent=35 // pred_check
          %p299 = pneg %p98
        $region46: #{tpu_custom_call.1} parent=35 // pred_check_branch
          %301 = sbr.rel (%p299) target = $region48
        $region47: #{tpu_custom_call.1} parent=35 // pred_region
          %302 = dma.done [#allocation6], 2048
        $region48: #{tpu_custom_call.1} parent=35 // pred_fallthru
          _
        %s303 = sand.u32 %s38, 1
        %s304 = scalar_lea.sflag [#allocation3], %s303
        %s305 = sand.u32 %s38, 1
        %s306 = smul.addr %s305, 256
        %s307 = scalar_lea.vmem [#allocation2], %s306
        %p308 = pneg %p51
        %p309 = pneg %p48
        %s310 = sand.u32 %s30, 1
        %s311 = scalar_lea.sflag [#allocation6], %s310
        %s312 = sand.u32 %s64, 1
        %s313 = smul.addr %s312, 256
        %s314 = scalar_lea.vmem [#allocation5], %s313
        %p315 = pneg %p77
        %p316 = pneg %p74
        %p317 = pneg %p98
        %p318 = pneg %p95
        %p319 = pneg %p119
        %p320 = pneg %p116
        %p321 = pneg %p145
        %p322 = pneg %p142
        %s323 = sand.u32 %s132, 1
        %s324 = scalar_lea.sflag [#allocation4], %s323
        %s325 = sand.u32 %s132, 1
        %s326 = smul.addr %s325, 256
        %s327 = scalar_lea.vmem [#allocation8], %s326
        %p328 = pneg %p171
        %p329 = pneg %p168
        %s330 = sand.u32 %s30, 1
        %s331 = scalar_lea.sflag [#allocation10], %s330
        %s332 = sand.u32 %s158, 1
        %s333 = smul.addr %s332, 256
        %s334 = scalar_lea.vmem [#allocation9], %s333
        %p335 = pneg %p197
        %p336 = pneg %p194
        %s337 = sand.u32 %s30, 1
        %s338 = scalar_lea.sflag [#allocation10], %s337
        %s339 = sand.u32 %s184, 1
        %s340 = smul.addr %s339, 256
        %s341 = scalar_lea.vmem [#allocation11], %s340
        %s342 = smul.u32 32, %s30
        %s343 = smul.u32 32, %s30
        %s344 = smul.u32 32, %s30
        %s345 = smul.u32 32, %s30
        %s346 = smul.u32 32, %s30
        %v348 = vld [vmem:[%s285] sm:$0xff]
        %v349 = vld [vmem:[%s285 + $0x8] sm:$0xff]
        %v350 = vld [vmem:[%s285 + $0x10] sm:$0xff]
        %v351 = vld [vmem:[%s285 + $0x18] sm:$0xff]
        %v352 = vld [vmem:[%s285 + $0x20] sm:$0xff]
        %v353 = vld [vmem:[%s285 + $0x28] sm:$0xff]
        %v354 = vld [vmem:[%s285 + $0x30] sm:$0xff]
        %v355 = vld [vmem:[%s285 + $0x38] sm:$0xff]
        %v356 = vld [vmem:[%s285 + $0x40] sm:$0xff]
        %v357 = vld [vmem:[%s285 + $0x48] sm:$0xff]
        %v358 = vld [vmem:[%s285 + $0x50] sm:$0xff]
        %v359 = vld [vmem:[%s285 + $0x58] sm:$0xff]
        %v360 = vld [vmem:[%s285 + $0x60] sm:$0xff]
        %v361 = vld [vmem:[%s285 + $0x68] sm:$0xff]
        %v362 = vld [vmem:[%s285 + $0x70] sm:$0xff]
        %v363 = vld [vmem:[%s285 + $0x78] sm:$0xff]
        %v364 = vld [vmem:[%s285 + $0x80] sm:$0xff]
        %v365 = vld [vmem:[%s285 + $0x88] sm:$0xff]
        %v366 = vld [vmem:[%s285 + $0x90] sm:$0xff]
        %v367 = vld [vmem:[%s285 + $0x98] sm:$0xff]
        %v368 = vld [vmem:[%s285 + $0xa0] sm:$0xff]
        %v369 = vld [vmem:[%s285 + $0xa8] sm:$0xff]
        %v370 = vld [vmem:[%s285 + $0xb0] sm:$0xff]
        %v371 = vld [vmem:[%s285 + $0xb8] sm:$0xff]
        %v372 = vld [vmem:[%s285 + $0xc0] sm:$0xff]
        %v373 = vld [vmem:[%s285 + $0xc8] sm:$0xff]
        %v374 = vld [vmem:[%s285 + $0xd0] sm:$0xff]
        %v375 = vld [vmem:[%s285 + $0xd8] sm:$0xff]
        %v376 = vld [vmem:[%s285 + $0xe0] sm:$0xff]
        %v377 = vld [vmem:[%s285 + $0xe8] sm:$0xff]
        %v378 = vld [vmem:[%s285 + $0xf0] sm:$0xff]
        %v379 = vld [vmem:[%s285 + $0xf8] sm:$0xff]
        %v380 = vpack.c.bf16 %v349, %v348
        %v381 = vpack.c.bf16 %v351, %v350
        %v382 = vpack.c.bf16 %v353, %v352
        %v383 = vpack.c.bf16 %v355, %v354
        %v384 = vpack.c.bf16 %v357, %v356
        %v385 = vpack.c.bf16 %v359, %v358
        %v386 = vpack.c.bf16 %v361, %v360
        %v387 = vpack.c.bf16 %v363, %v362
        %v388 = vpack.c.bf16 %v365, %v364
        %v389 = vpack.c.bf16 %v367, %v366
        %v390 = vpack.c.bf16 %v369, %v368
        %v391 = vpack.c.bf16 %v371, %v370
        %v392 = vpack.c.bf16 %v373, %v372
        %v393 = vpack.c.bf16 %v375, %v374
        %v394 = vpack.c.bf16 %v377, %v376
        %v395 = vpack.c.bf16 %v379, %v378
        %v396 = vld [vmem:[#allocation7] sm:$0xff]
        %v397 = vld [vmem:[#allocation7 + $0x8] sm:$0xff]
        %v398 = vld [vmem:[#allocation7 + $0x10] sm:$0xff]
        %v399 = vld [vmem:[#allocation7 + $0x18] sm:$0xff]
        %v400 = vld [vmem:[#allocation7 + $0x20] sm:$0xff]
        %v401 = vld [vmem:[#allocation7 + $0x28] sm:$0xff]
        %v402 = vld [vmem:[#allocation7 + $0x30] sm:$0xff]
        %v403 = vld [vmem:[#allocation7 + $0x38] sm:$0xff]
        %v404 = vld [vmem:[#allocation7 + $0x40] sm:$0xff]
        %v405 = vld [vmem:[#allocation7 + $0x48] sm:$0xff]
        %v406 = vld [vmem:[#allocation7 + $0x50] sm:$0xff]
        %v407 = vld [vmem:[#allocation7 + $0x58] sm:$0xff]
        %v408 = vld [vmem:[#allocation7 + $0x60] sm:$0xff]
        %v409 = vld [vmem:[#allocation7 + $0x68] sm:$0xff]
        %v410 = vld [vmem:[#allocation7 + $0x70] sm:$0xff]
        %v411 = vld [vmem:[#allocation7 + $0x78] sm:$0xff]
        %v412 = vld [vmem:[%s3] sm:$0x3]
        %v414 = vlaneseq
        %v415 = vshrl.u32 %v414, 7
        %v416 = vsub.s32 0, %v415
        %v417 = vrot.slane %v412, %v416
        %v418 = vlaneseq
        %v419 = vshrl.u32 %v418, 7
        %v420 = vsub.s32 1, %v419
        %v421 = vrot.slane %v412, %v420
        %v440 = vunpack.c.l.b16 %v396
        %v441 = vunpack.c.h.b16 %v396
        %v442 = vunpack.c.l.b16 %v397
        %v443 = vunpack.c.h.b16 %v397
        %v444 = vunpack.c.l.b16 %v398
        %v445 = vunpack.c.h.b16 %v398
        %v446 = vunpack.c.l.b16 %v399
        %v447 = vunpack.c.h.b16 %v399
        %v448 = vunpack.c.l.b16 %v400
        %v449 = vunpack.c.h.b16 %v400
        %v450 = vunpack.c.l.b16 %v401
        %v451 = vunpack.c.h.b16 %v401
        %v452 = vunpack.c.l.b16 %v402
        %v453 = vunpack.c.h.b16 %v402
        %v454 = vunpack.c.l.b16 %v403
        %v455 = vunpack.c.h.b16 %v403
        %v456 = vunpack.c.l.b16 %v404
        %v457 = vunpack.c.h.b16 %v404
        %v458 = vunpack.c.l.b16 %v405
        %v459 = vunpack.c.h.b16 %v405
        %v460 = vunpack.c.l.b16 %v406
        %v461 = vunpack.c.h.b16 %v406
        %v462 = vunpack.c.l.b16 %v407
        %v463 = vunpack.c.h.b16 %v407
        %v464 = vunpack.c.l.b16 %v408
        %v465 = vunpack.c.h.b16 %v408
        %v466 = vunpack.c.l.b16 %v409
        %v467 = vunpack.c.h.b16 %v409
        %v468 = vunpack.c.l.b16 %v410
        %v469 = vunpack.c.h.b16 %v410
        %v470 = vunpack.c.l.b16 %v411
        %v471 = vunpack.c.h.b16 %v411
        %v472 = vpack.c.b16 %v442, %v440
        %v473 = vpack.c.b16 %v443, %v441
        %v474 = vpack.c.b16 %v446, %v444
        %v475 = vpack.c.b16 %v447, %v445
        %v476 = vpack.c.b16 %v450, %v448
        %v477 = vpack.c.b16 %v451, %v449
        %v478 = vpack.c.b16 %v454, %v452
        %v479 = vpack.c.b16 %v455, %v453
        %v480 = vpack.c.b16 %v458, %v456
        %v481 = vpack.c.b16 %v459, %v457
        %v482 = vpack.c.b16 %v462, %v460
        %v483 = vpack.c.b16 %v463, %v461
        %v484 = vpack.c.b16 %v466, %v464
        %v485 = vpack.c.b16 %v467, %v465
        %v486 = vpack.c.b16 %v470, %v468
        %v487 = vpack.c.b16 %v471, %v469
        %504 = vmatprep.subr.bf16.mxu0 %v473
        %505 = vmatpush1.bf16.msra.mxu0 %v472
        %506 = vmatprep.subr.bf16.mxu0 %v475
        %507 = vmatpush1.bf16.msra.mxu0 %v474
        %508 = vmatprep.subr.bf16.mxu0 %v477
        %509 = vmatpush1.bf16.msra.mxu0 %v476
        %510 = vmatprep.subr.bf16.mxu0 %v479
        %511 = vmatpush1.bf16.msra.mxu0 %v478
        %512 = vmatprep.subr.bf16.mxu0 %v481
        %513 = vmatpush1.bf16.msra.mxu0 %v480
        %514 = vmatprep.subr.bf16.mxu0 %v483
        %515 = vmatpush1.bf16.msra.mxu0 %v482
        %516 = vmatprep.subr.bf16.mxu0 %v485
        %517 = vmatpush1.bf16.msra.mxu0 %v484
        %518 = vmatprep.subr.bf16.mxu0 %v487
        %519 = vmatpush1.bf16.msra.mxu0 %v486
        %520 = vmatprep.subr.bf16.mxu0 0
        %521 = vmatpush1.bf16.msra.mxu0 0
        %522 = vmatprep.subr.bf16.mxu0 0
        %523 = vmatpush1.bf16.msra.mxu0 0
        %524 = vmatprep.subr.bf16.mxu0 0
        %525 = vmatpush1.bf16.msra.mxu0 0
        %526 = vmatprep.subr.bf16.mxu0 0
        %527 = vmatpush1.bf16.msra.mxu0 0
        %528 = vmatprep.subr.bf16.mxu0 0
        %529 = vmatpush1.bf16.msra.mxu0 0
        %530 = vmatprep.subr.bf16.mxu0 0
        %531 = vmatpush1.bf16.msra.mxu0 0
        %532 = vmatprep.subr.bf16.mxu0 0
        %533 = vmatpush1.bf16.msra.mxu0 0
        %534 = vmatprep.subr.bf16.mxu0 0
        %535 = vmatpush1.bf16.msra.mxu0 0
        %536 = vmatprep.mubr.bf16.mxu0 0
        %537 = vmatmul.mubr.bf16.gmra.mrb[0].mxu0 %v380
        %v538 = vpop.f32.mrb[0].mxu0
        %v539 = vadd.f32 %v417, %v538
        %v540 = vpop.f32.mrb[0].mxu0
        %v541 = vadd.f32 %v421, %v540
        %v542 = vpop.f32.mrb[0].mxu0
        %v543 = vadd.f32 %v417, %v542
        %v544 = vpop.f32.mrb[0].mxu0
        %v545 = vadd.f32 %v421, %v544
        %546 = vmatprep.mubr.bf16.mxu0 0
        %547 = vmatmul.mubr.bf16.gmra.mrb[0].mxu0 %v381
        %v548 = vpop.f32.mrb[0].mxu0
        %v549 = vadd.f32 %v417, %v548
        %v550 = vpop.f32.mrb[0].mxu0
        %v551 = vadd.f32 %v421, %v550
        %v552 = vpop.f32.mrb[0].mxu0
        %v553 = vadd.f32 %v417, %v552
        %v554 = vpop.f32.mrb[0].mxu0
        %v555 = vadd.f32 %v421, %v554
        %556 = vmatprep.mubr.bf16.mxu0 0
        %557 = vmatmul.mubr.bf16.gmra.mrb[0].mxu0 %v382
        %v558 = vpop.f32.mrb[0].mxu0
        %v559 = vadd.f32 %v417, %v558
        %v560 = vpop.f32.mrb[0].mxu0
        %v561 = vadd.f32 %v421, %v560
        %v562 = vpop.f32.mrb[0].mxu0
        %v563 = vadd.f32 %v417, %v562
        %v564 = vpop.f32.mrb[0].mxu0
        %v565 = vadd.f32 %v421, %v564
        %566 = vmatprep.mubr.bf16.mxu0 0
        %567 = vmatmul.mubr.bf16.gmra.mrb[0].mxu0 %v383
        %v568 = vpop.f32.mrb[0].mxu0
        %v569 = vadd.f32 %v417, %v568
        %v570 = vpop.f32.mrb[0].mxu0
        %v571 = vadd.f32 %v421, %v570
        %v572 = vpop.f32.mrb[0].mxu0
        %v573 = vadd.f32 %v417, %v572
        %v574 = vpop.f32.mrb[0].mxu0
        %v575 = vadd.f32 %v421, %v574
        %576 = vmatprep.mubr.bf16.mxu0 0
        %577 = vmatmul.mubr.bf16.gmra.mrb[0].mxu0 %v384
        %v578 = vpop.f32.mrb[0].mxu0
        %v579 = vadd.f32 %v417, %v578
        %v580 = vpop.f32.mrb[0].mxu0
        %v581 = vadd.f32 %v421, %v580
        %v582 = vpop.f32.mrb[0].mxu0
        %v583 = vadd.f32 %v417, %v582
        %v584 = vpop.f32.mrb[0].mxu0
        %v585 = vadd.f32 %v421, %v584
        %586 = vmatprep.mubr.bf16.mxu0 0
        %587 = vmatmul.mubr.bf16.gmra.mrb[0].mxu0 %v385
        %v588 = vpop.f32.mrb[0].mxu0
        %v589 = vadd.f32 %v417, %v588
        %v590 = vpop.f32.mrb[0].mxu0
        %v591 = vadd.f32 %v421, %v590
        %v592 = vpop.f32.mrb[0].mxu0
        %v593 = vadd.f32 %v417, %v592
        %v594 = vpop.f32.mrb[0].mxu0
        %v595 = vadd.f32 %v421, %v594
        %596 = vmatprep.mubr.bf16.mxu0 0
        %597 = vmatmul.mubr.bf16.gmra.mrb[0].mxu0 %v386
        %v598 = vpop.f32.mrb[0].mxu0
        %v599 = vadd.f32 %v417, %v598
        %v600 = vpop.f32.mrb[0].mxu0
        %v601 = vadd.f32 %v421, %v600
        %v602 = vpop.f32.mrb[0].mxu0
        %v603 = vadd.f32 %v417, %v602
        %v604 = vpop.f32.mrb[0].mxu0
        %v605 = vadd.f32 %v421, %v604
        %606 = vmatprep.mubr.bf16.mxu0 0
        %607 = vmatmul.mubr.bf16.gmra.mrb[0].mxu0 %v387
        %v608 = vpop.f32.mrb[0].mxu0
        %v609 = vadd.f32 %v417, %v608
        %v610 = vpop.f32.mrb[0].mxu0
        %v611 = vadd.f32 %v421, %v610
        %v612 = vpop.f32.mrb[0].mxu0
        %v613 = vadd.f32 %v417, %v612
        %v614 = vpop.f32.mrb[0].mxu0
        %v615 = vadd.f32 %v421, %v614
        %616 = vmatprep.mubr.bf16.mxu0 0
        %617 = vmatmul.mubr.bf16.gmra.mrb[0].mxu0 %v388
        %v618 = vpop.f32.mrb[0].mxu0
        %v619 = vadd.f32 %v417, %v618
        %v620 = vpop.f32.mrb[0].mxu0
        %v621 = vadd.f32 %v421, %v620
        %v622 = vpop.f32.mrb[0].mxu0
        %v623 = vadd.f32 %v417, %v622
        %v624 = vpop.f32.mrb[0].mxu0
        %v625 = vadd.f32 %v421, %v624
        %626 = vmatprep.mubr.bf16.mxu0 0
        %627 = vmatmul.mubr.bf16.gmra.mrb[0].mxu0 %v389
        %v628 = vpop.f32.mrb[0].mxu0
        %v629 = vadd.f32 %v417, %v628
        %v630 = vpop.f32.mrb[0].mxu0
        %v631 = vadd.f32 %v421, %v630
        %v632 = vpop.f32.mrb[0].mxu0
        %v633 = vadd.f32 %v417, %v632
        %v634 = vpop.f32.mrb[0].mxu0
        %v635 = vadd.f32 %v421, %v634
        %636 = vmatprep.mubr.bf16.mxu0 0
        %637 = vmatmul.mubr.bf16.gmra.mrb[0].mxu0 %v390
        %v638 = vpop.f32.mrb[0].mxu0
        %v639 = vadd.f32 %v417, %v638
        %v640 = vpop.f32.mrb[0].mxu0
        %v641 = vadd.f32 %v421, %v640
        %v642 = vpop.f32.mrb[0].mxu0
        %v643 = vadd.f32 %v417, %v642
        %v644 = vpop.f32.mrb[0].mxu0
        %v645 = vadd.f32 %v421, %v644
        %646 = vmatprep.mubr.bf16.mxu0 0
        %647 = vmatmul.mubr.bf16.gmra.mrb[0].mxu0 %v391
        %v648 = vpop.f32.mrb[0].mxu0
        %v649 = vadd.f32 %v417, %v648
        %v650 = vpop.f32.mrb[0].mxu0
        %v651 = vadd.f32 %v421, %v650
        %v652 = vpop.f32.mrb[0].mxu0
        %v653 = vadd.f32 %v417, %v652
        %v654 = vpop.f32.mrb[0].mxu0
        %v655 = vadd.f32 %v421, %v654
        %656 = vmatprep.mubr.bf16.mxu0 0
        %657 = vmatmul.mubr.bf16.gmra.mrb[0].mxu0 %v392
        %v658 = vpop.f32.mrb[0].mxu0
        %v659 = vadd.f32 %v417, %v658
        %v660 = vpop.f32.mrb[0].mxu0
        %v661 = vadd.f32 %v421, %v660
        %v662 = vpop.f32.mrb[0].mxu0
        %v663 = vadd.f32 %v417, %v662
        %v664 = vpop.f32.mrb[0].mxu0
        %v665 = vadd.f32 %v421, %v664
        %666 = vmatprep.mubr.bf16.mxu0 0
        %667 = vmatmul.mubr.bf16.gmra.mrb[0].mxu0 %v393
        %v668 = vpop.f32.mrb[0].mxu0
        %v669 = vadd.f32 %v417, %v668
        %v670 = vpop.f32.mrb[0].mxu0
        %v671 = vadd.f32 %v421, %v670
        %v672 = vpop.f32.mrb[0].mxu0
        %v673 = vadd.f32 %v417, %v672
        %v674 = vpop.f32.mrb[0].mxu0
        %v675 = vadd.f32 %v421, %v674
        %676 = vmatprep.mubr.bf16.mxu0 0
        %677 = vmatmul.mubr.bf16.gmra.mrb[0].mxu0 %v394
        %v678 = vpop.f32.mrb[0].mxu0
        %v679 = vadd.f32 %v417, %v678
        %v680 = vpop.f32.mrb[0].mxu0
        %v681 = vadd.f32 %v421, %v680
        %v682 = vpop.f32.mrb[0].mxu0
        %v683 = vadd.f32 %v417, %v682
        %v684 = vpop.f32.mrb[0].mxu0
        %v685 = vadd.f32 %v421, %v684
        %686 = vmatprep.mubr.bf16.mxu0 0
        %687 = vmatmul.mubr.bf16.gmra.mrb[0].mxu0 %v395
        %v688 = vpop.f32.mrb[0].mxu0
        %v689 = vadd.f32 %v417, %v688
        %v690 = vpop.f32.mrb[0].mxu0
        %v691 = vadd.f32 %v421, %v690
        %v692 = vpop.f32.mrb[0].mxu0
        %v693 = vadd.f32 %v417, %v692
        %v694 = vpop.f32.mrb[0].mxu0
        %v695 = vadd.f32 %v421, %v694
        %696 = vdwg.mxu0
        %v697 = vmul.f32 %v541, 0.5
        %v698 = vmul.f32 %v545, 0.5
        %v699 = vmul.f32 %v551, 0.5
        %v700 = vmul.f32 %v555, 0.5
        %v701 = vmul.f32 %v561, 0.5
        %v702 = vmul.f32 %v565, 0.5
        %v703 = vmul.f32 %v571, 0.5
        %v704 = vmul.f32 %v575, 0.5
        %v705 = vmul.f32 %v581, 0.5
        %v706 = vmul.f32 %v585, 0.5
        %v707 = vmul.f32 %v591, 0.5
        %v708 = vmul.f32 %v595, 0.5
        %v709 = vmul.f32 %v601, 0.5
        %v710 = vmul.f32 %v605, 0.5
        %v711 = vmul.f32 %v611, 0.5
        %v712 = vmul.f32 %v615, 0.5
        %v713 = vmul.f32 %v621, 0.5
        %v714 = vmul.f32 %v625, 0.5
        %v715 = vmul.f32 %v631, 0.5
        %v716 = vmul.f32 %v635, 0.5
        %v717 = vmul.f32 %v641, 0.5
        %v718 = vmul.f32 %v645, 0.5
        %v719 = vmul.f32 %v651, 0.5
        %v720 = vmul.f32 %v655, 0.5
        %v721 = vmul.f32 %v661, 0.5
        %v722 = vmul.f32 %v665, 0.5
        %v723 = vmul.f32 %v671, 0.5
        %v724 = vmul.f32 %v675, 0.5
        %v725 = vmul.f32 %v681, 0.5
        %v726 = vmul.f32 %v685, 0.5
        %v727 = vmul.f32 %v691, 0.5
        %v728 = vmul.f32 %v695, 0.5
        %v729 = vmul.f32 %v697, 1.442695
        %v730 = vpow.pop %v729
        %v731 = vmul.f32 %v698, 1.442695
        %v732 = vpow.pop %v731
        %v733 = vmul.f32 %v699, 1.442695
        %v734 = vpow.pop %v733
        %v735 = vmul.f32 %v700, 1.442695
        %v736 = vpow.pop %v735
        %v737 = vmul.f32 %v701, 1.442695
        %v738 = vpow.pop %v737
        %v739 = vmul.f32 %v702, 1.442695
        %v740 = vpow.pop %v739
        %v741 = vmul.f32 %v703, 1.442695
        %v742 = vpow.pop %v741
        %v743 = vmul.f32 %v704, 1.442695
        %v744 = vpow.pop %v743
        %v745 = vmul.f32 %v705, 1.442695
        %v746 = vpow.pop %v745
        %v747 = vmul.f32 %v706, 1.442695
        %v748 = vpow.pop %v747
        %v749 = vmul.f32 %v707, 1.442695
        %v750 = vpow.pop %v749
        %v751 = vmul.f32 %v708, 1.442695
        %v752 = vpow.pop %v751
        %v753 = vmul.f32 %v709, 1.442695
        %v754 = vpow.pop %v753
        %v755 = vmul.f32 %v710, 1.442695
        %v756 = vpow.pop %v755
        %v757 = vmul.f32 %v711, 1.442695
        %v758 = vpow.pop %v757
        %v759 = vmul.f32 %v712, 1.442695
        %v760 = vpow.pop %v759
        %v761 = vmul.f32 %v713, 1.442695
        %v762 = vpow.pop %v761
        %v763 = vmul.f32 %v714, 1.442695
        %v764 = vpow.pop %v763
        %v765 = vmul.f32 %v715, 1.442695
        %v766 = vpow.pop %v765
        %v767 = vmul.f32 %v716, 1.442695
        %v768 = vpow.pop %v767
        %v769 = vmul.f32 %v717, 1.442695
        %v770 = vpow.pop %v769
        %v771 = vmul.f32 %v718, 1.442695
        %v772 = vpow.pop %v771
        %v773 = vmul.f32 %v719, 1.442695
        %v774 = vpow.pop %v773
        %v775 = vmul.f32 %v720, 1.442695
        %v776 = vpow.pop %v775
        %v777 = vmul.f32 %v721, 1.442695
        %v778 = vpow.pop %v777
        %v779 = vmul.f32 %v722, 1.442695
        %v780 = vpow.pop %v779
        %v781 = vmul.f32 %v723, 1.442695
        %v782 = vpow.pop %v781
        %v783 = vmul.f32 %v724, 1.442695
        %v784 = vpow.pop %v783
        %v785 = vmul.f32 %v725, 1.442695
        %v786 = vpow.pop %v785
        %v787 = vmul.f32 %v726, 1.442695
        %v788 = vpow.pop %v787
        %v789 = vmul.f32 %v727, 1.442695
        %v790 = vpow.pop %v789
        %v791 = vmul.f32 %v728, 1.442695
        %v792 = vpow.pop %v791
        %v793 = vld [vmem:[%s294] sm:$0xff]
        %v794 = vld [vmem:[%s294 + $0x8] sm:$0xff]
        %v795 = vld [vmem:[%s294 + $0x10] sm:$0xff]
        %v796 = vld [vmem:[%s294 + $0x18] sm:$0xff]
        %v797 = vld [vmem:[%s294 + $0x20] sm:$0xff]
        %v798 = vld [vmem:[%s294 + $0x28] sm:$0xff]
        %v799 = vld [vmem:[%s294 + $0x30] sm:$0xff]
        %v800 = vld [vmem:[%s294 + $0x38] sm:$0xff]
        %v801 = vld [vmem:[%s294 + $0x40] sm:$0xff]
        %v802 = vld [vmem:[%s294 + $0x48] sm:$0xff]
        %v803 = vld [vmem:[%s294 + $0x50] sm:$0xff]
        %v804 = vld [vmem:[%s294 + $0x58] sm:$0xff]
        %v805 = vld [vmem:[%s294 + $0x60] sm:$0xff]
        %v806 = vld [vmem:[%s294 + $0x68] sm:$0xff]
        %v807 = vld [vmem:[%s294 + $0x70] sm:$0xff]
        %v808 = vld [vmem:[%s294 + $0x78] sm:$0xff]
        %v809 = vld [vmem:[%s294 + $0x80] sm:$0xff]
        %v810 = vld [vmem:[%s294 + $0x88] sm:$0xff]
        %v811 = vld [vmem:[%s294 + $0x90] sm:$0xff]
        %v812 = vld [vmem:[%s294 + $0x98] sm:$0xff]
        %v813 = vld [vmem:[%s294 + $0xa0] sm:$0xff]
        %v814 = vld [vmem:[%s294 + $0xa8] sm:$0xff]
        %v815 = vld [vmem:[%s294 + $0xb0] sm:$0xff]
        %v816 = vld [vmem:[%s294 + $0xb8] sm:$0xff]
        %v817 = vld [vmem:[%s294 + $0xc0] sm:$0xff]
        %v818 = vld [vmem:[%s294 + $0xc8] sm:$0xff]
        %v819 = vld [vmem:[%s294 + $0xd0] sm:$0xff]
        %v820 = vld [vmem:[%s294 + $0xd8] sm:$0xff]
        %v821 = vld [vmem:[%s294 + $0xe0] sm:$0xff]
        %v822 = vld [vmem:[%s294 + $0xe8] sm:$0xff]
        %v823 = vld [vmem:[%s294 + $0xf0] sm:$0xff]
        %v824 = vld [vmem:[%s294 + $0xf8] sm:$0xff]
        %v825 = vmul.f32 %v793, %v730
        %v826 = vmul.f32 %v794, %v732
        %v827 = vmul.f32 %v795, %v734
        %v828 = vmul.f32 %v796, %v736
        %v829 = vmul.f32 %v797, %v738
        %v830 = vmul.f32 %v798, %v740
        %v831 = vmul.f32 %v799, %v742
        %v832 = vmul.f32 %v800, %v744
        %v833 = vmul.f32 %v801, %v746
        %v834 = vmul.f32 %v802, %v748
        %v835 = vmul.f32 %v803, %v750
        %v836 = vmul.f32 %v804, %v752
        %v837 = vmul.f32 %v805, %v754
        %v838 = vmul.f32 %v806, %v756
        %v839 = vmul.f32 %v807, %v758
        %v840 = vmul.f32 %v808, %v760
        %v841 = vmul.f32 %v809, %v762
        %v842 = vmul.f32 %v810, %v764
        %v843 = vmul.f32 %v811, %v766
        %v844 = vmul.f32 %v812, %v768
        %v845 = vmul.f32 %v813, %v770
        %v846 = vmul.f32 %v814, %v772
        %v847 = vmul.f32 %v815, %v774
        %v848 = vmul.f32 %v816, %v776
        %v849 = vmul.f32 %v817, %v778
        %v850 = vmul.f32 %v818, %v780
        %v851 = vmul.f32 %v819, %v782
        %v852 = vmul.f32 %v820, %v784
        %v853 = vmul.f32 %v821, %v786
        %v854 = vmul.f32 %v822, %v788
        %v855 = vmul.f32 %v823, %v790
        %v856 = vmul.f32 %v824, %v792
        %v857 = vadd.f32 %v825, %v539
        %v858 = vadd.f32 %v826, %v543
        %v859 = vadd.f32 %v827, %v549
        %v860 = vadd.f32 %v828, %v553
        %v861 = vadd.f32 %v829, %v559
        %v862 = vadd.f32 %v830, %v563
        %v863 = vadd.f32 %v831, %v569
        %v864 = vadd.f32 %v832, %v573
        %v865 = vadd.f32 %v833, %v579
        %v866 = vadd.f32 %v834, %v583
        %v867 = vadd.f32 %v835, %v589
        %v868 = vadd.f32 %v836, %v593
        %v869 = vadd.f32 %v837, %v599
        %v870 = vadd.f32 %v838, %v603
        %v871 = vadd.f32 %v839, %v609
        %v872 = vadd.f32 %v840, %v613
        %v873 = vadd.f32 %v841, %v619
        %v874 = vadd.f32 %v842, %v623
        %v875 = vadd.f32 %v843, %v629
        %v876 = vadd.f32 %v844, %v633
        %v877 = vadd.f32 %v845, %v639
        %v878 = vadd.f32 %v846, %v643
        %v879 = vadd.f32 %v847, %v649
        %v880 = vadd.f32 %v848, %v653
        %v881 = vadd.f32 %v849, %v659
        %v882 = vadd.f32 %v850, %v663
        %v883 = vadd.f32 %v851, %v669
        %v884 = vadd.f32 %v852, %v673
        %v885 = vadd.f32 %v853, %v679
        %v886 = vadd.f32 %v854, %v683
        %v887 = vadd.f32 %v855, %v689
        %v888 = vadd.f32 %v856, %v693
        %889 = vst [vmem:[%s327] sm:$0xff] %v857
        %890 = vst [vmem:[%s327 + $0x8] sm:$0xff] %v858
        %891 = vst [vmem:[%s327 + $0x10] sm:$0xff] %v859
        %892 = vst [vmem:[%s327 + $0x18] sm:$0xff] %v860
        %893 = vst [vmem:[%s327 + $0x20] sm:$0xff] %v861
        %894 = vst [vmem:[%s327 + $0x28] sm:$0xff] %v862
        %895 = vst [vmem:[%s327 + $0x30] sm:$0xff] %v863
        %896 = vst [vmem:[%s327 + $0x38] sm:$0xff] %v864
        %897 = vst [vmem:[%s327 + $0x40] sm:$0xff] %v865
        %898 = vst [vmem:[%s327 + $0x48] sm:$0xff] %v866
        %899 = vst [vmem:[%s327 + $0x50] sm:$0xff] %v867
        %900 = vst [vmem:[%s327 + $0x58] sm:$0xff] %v868
        %901 = vst [vmem:[%s327 + $0x60] sm:$0xff] %v869
        %902 = vst [vmem:[%s327 + $0x68] sm:$0xff] %v870
        %903 = vst [vmem:[%s327 + $0x70] sm:$0xff] %v871
        %904 = vst [vmem:[%s327 + $0x78] sm:$0xff] %v872
        %905 = vst [vmem:[%s327 + $0x80] sm:$0xff] %v873
        %906 = vst [vmem:[%s327 + $0x88] sm:$0xff] %v874
        %907 = vst [vmem:[%s327 + $0x90] sm:$0xff] %v875
        %908 = vst [vmem:[%s327 + $0x98] sm:$0xff] %v876
        %909 = vst [vmem:[%s327 + $0xa0] sm:$0xff] %v877
        %910 = vst [vmem:[%s327 + $0xa8] sm:$0xff] %v878
        %911 = vst [vmem:[%s327 + $0xb0] sm:$0xff] %v879
        %912 = vst [vmem:[%s327 + $0xb8] sm:$0xff] %v880
        %913 = vst [vmem:[%s327 + $0xc0] sm:$0xff] %v881
        %914 = vst [vmem:[%s327 + $0xc8] sm:$0xff] %v882
        %915 = vst [vmem:[%s327 + $0xd0] sm:$0xff] %v883
        %916 = vst [vmem:[%s327 + $0xd8] sm:$0xff] %v884
        %917 = vst [vmem:[%s327 + $0xe0] sm:$0xff] %v885
        %918 = vst [vmem:[%s327 + $0xe8] sm:$0xff] %v886
        %919 = vst [vmem:[%s327 + $0xf0] sm:$0xff] %v887
        %920 = vst [vmem:[%s327 + $0xf8] sm:$0xff] %v888
        %921 = vst [vmem:[%s334] sm:$0xff] %v539
        %922 = vst [vmem:[%s334 + $0x8] sm:$0xff] %v543
        %923 = vst [vmem:[%s334 + $0x10] sm:$0xff] %v549
        %924 = vst [vmem:[%s334 + $0x18] sm:$0xff] %v553
        %925 = vst [vmem:[%s334 + $0x20] sm:$0xff] %v559
        %926 = vst [vmem:[%s334 + $0x28] sm:$0xff] %v563
        %927 = vst [vmem:[%s334 + $0x30] sm:$0xff] %v569
        %928 = vst [vmem:[%s334 + $0x38] sm:$0xff] %v573
        %929 = vst [vmem:[%s334 + $0x40] sm:$0xff] %v579
        %930 = vst [vmem:[%s334 + $0x48] sm:$0xff] %v583
        %931 = vst [vmem:[%s334 + $0x50] sm:$0xff] %v589
        %932 = vst [vmem:[%s334 + $0x58] sm:$0xff] %v593
        %933 = vst [vmem:[%s334 + $0x60] sm:$0xff] %v599
        %934 = vst [vmem:[%s334 + $0x68] sm:$0xff] %v603
        %935 = vst [vmem:[%s334 + $0x70] sm:$0xff] %v609
        %936 = vst [vmem:[%s334 + $0x78] sm:$0xff] %v613
        %937 = vst [vmem:[%s334 + $0x80] sm:$0xff] %v619
        %938 = vst [vmem:[%s334 + $0x88] sm:$0xff] %v623
        %939 = vst [vmem:[%s334 + $0x90] sm:$0xff] %v629
        %940 = vst [vmem:[%s334 + $0x98] sm:$0xff] %v633
        %941 = vst [vmem:[%s334 + $0xa0] sm:$0xff] %v639
        %942 = vst [vmem:[%s334 + $0xa8] sm:$0xff] %v643
        %943 = vst [vmem:[%s334 + $0xb0] sm:$0xff] %v649
        %944 = vst [vmem:[%s334 + $0xb8] sm:$0xff] %v653
        %945 = vst [vmem:[%s334 + $0xc0] sm:$0xff] %v659
        %946 = vst [vmem:[%s334 + $0xc8] sm:$0xff] %v663
        %947 = vst [vmem:[%s334 + $0xd0] sm:$0xff] %v669
        %948 = vst [vmem:[%s334 + $0xd8] sm:$0xff] %v673
        %949 = vst [vmem:[%s334 + $0xe0] sm:$0xff] %v679
        %950 = vst [vmem:[%s334 + $0xe8] sm:$0xff] %v683
        %951 = vst [vmem:[%s334 + $0xf0] sm:$0xff] %v689
        %952 = vst [vmem:[%s334 + $0xf8] sm:$0xff] %v693
        %953 = vst [vmem:[%s341] sm:$0xff] %v541
        %954 = vst [vmem:[%s341 + $0x8] sm:$0xff] %v545
        %955 = vst [vmem:[%s341 + $0x10] sm:$0xff] %v551
        %956 = vst [vmem:[%s341 + $0x18] sm:$0xff] %v555
        %957 = vst [vmem:[%s341 + $0x20] sm:$0xff] %v561
        %958 = vst [vmem:[%s341 + $0x28] sm:$0xff] %v565
        %959 = vst [vmem:[%s341 + $0x30] sm:$0xff] %v571
        %960 = vst [vmem:[%s341 + $0x38] sm:$0xff] %v575
        %961 = vst [vmem:[%s341 + $0x40] sm:$0xff] %v581
        %962 = vst [vmem:[%s341 + $0x48] sm:$0xff] %v585
        %963 = vst [vmem:[%s341 + $0x50] sm:$0xff] %v591
        %964 = vst [vmem:[%s341 + $0x58] sm:$0xff] %v595
        %965 = vst [vmem:[%s341 + $0x60] sm:$0xff] %v601
        %966 = vst [vmem:[%s341 + $0x68] sm:$0xff] %v605
        %967 = vst [vmem:[%s341 + $0x70] sm:$0xff] %v611
        %968 = vst [vmem:[%s341 + $0x78] sm:$0xff] %v615
        %969 = vst [vmem:[%s341 + $0x80] sm:$0xff] %v621
        %970 = vst [vmem:[%s341 + $0x88] sm:$0xff] %v625
        %971 = vst [vmem:[%s341 + $0x90] sm:$0xff] %v631
        %972 = vst [vmem:[%s341 + $0x98] sm:$0xff] %v635
        %973 = vst [vmem:[%s341 + $0xa0] sm:$0xff] %v641
        %974 = vst [vmem:[%s341 + $0xa8] sm:$0xff] %v645
        %975 = vst [vmem:[%s341 + $0xb0] sm:$0xff] %v651
        %976 = vst [vmem:[%s341 + $0xb8] sm:$0xff] %v655
        %977 = vst [vmem:[%s341 + $0xc0] sm:$0xff] %v661
        %978 = vst [vmem:[%s341 + $0xc8] sm:$0xff] %v665
        %979 = vst [vmem:[%s341 + $0xd0] sm:$0xff] %v671
        %980 = vst [vmem:[%s341 + $0xd8] sm:$0xff] %v675
        %981 = vst [vmem:[%s341 + $0xe0] sm:$0xff] %v681
        %982 = vst [vmem:[%s341 + $0xe8] sm:$0xff] %v685
        %983 = vst [vmem:[%s341 + $0xf0] sm:$0xff] %v691
        %984 = vst [vmem:[%s341 + $0xf8] sm:$0xff] %v695
        %s985 = sand.u32 %s132, 1
        %s986 = scalar_lea.sflag [#allocation4], %s985
        %s987 = sand.u32 %s132, 1
        %s988 = smul.addr %s987, 256
        %s989 = scalar_lea.vmem [#allocation8], %s988
        %s990 = sand.u32 %s30, 1
        %s991 = scalar_lea.sflag [#allocation10], %s990
        %s992 = sand.u32 %s158, 1
        %s993 = smul.addr %s992, 256
        %s994 = scalar_lea.vmem [#allocation9], %s993
        %s995 = sand.u32 %s30, 1
        %s996 = scalar_lea.sflag [#allocation10], %s995
        %s997 = sand.u32 %s184, 1
        %s998 = smul.addr %s997, 256
        %s999 = scalar_lea.vmem [#allocation11], %s998
        // Predicated region
        $region49: #{tpu_custom_call.1} parent=35 // pred_check
          %p1000 = pneg %p142
        $region50: #{tpu_custom_call.1} parent=35 // pred_check_branch
          %1002 = sbr.rel (%p1000) target = $region52
        $region51: #{tpu_custom_call.1} parent=35 // pred_region
          %s1003 = smul.u32 32, %s30
          %s1005 = ssub.s32 4096, 4096
          %1006 = vsyncadd %s986, %s1005
          %s1007 = smul.addr %s1003, 128
          %s1008 = scalar_lea.hbm %s4, %s1007
          %s1009 = sshll.u32 %s989, 4
          %s1010 = int_to_ptr.vmem [resolvable:$true] %s1009
          %1015 = dma.vmem_to_hbm [thread:$0]  %s1010, 4096, %s1008, %s986, 128, 128, 8
        $region52: #{tpu_custom_call.1} parent=35 // pred_fallthru
          _
        // Predicated region
        $region53: #{tpu_custom_call.1} parent=35 // pred_check
          %p1016 = pneg %p168
        $region54: #{tpu_custom_call.1} parent=35 // pred_check_branch
          %1018 = sbr.rel (%p1016) target = $region56
        $region55: #{tpu_custom_call.1} parent=35 // pred_region
          %s1019 = smul.u32 32, %s30
          %s1021 = ssub.s32 4096, 4096
          %1022 = vsyncadd %s991, %s1021
          %s1023 = smul.addr %s1019, 128
          %s1024 = scalar_lea.hbm %s5, %s1023
          %s1025 = sshll.u32 %s994, 4
          %s1026 = int_to_ptr.vmem [resolvable:$true] %s1025
          %1031 = dma.vmem_to_hbm [thread:$0]  %s1026, 4096, %s1024, %s991, 128, 128, 8
        $region56: #{tpu_custom_call.1} parent=35 // pred_fallthru
          _
        // Predicated region
        $region57: #{tpu_custom_call.1} parent=35 // pred_check
          %p1032 = pneg %p194
        $region58: #{tpu_custom_call.1} parent=35 // pred_check_branch
          %1034 = sbr.rel (%p1032) target = $region60
        $region59: #{tpu_custom_call.1} parent=35 // pred_region
          %s1035 = smul.u32 32, %s30
          %s1037 = ssub.s32 4096, 4096
          %1038 = vsyncadd %s996, %s1037
          %s1039 = smul.addr %s1035, 128
          %s1040 = scalar_lea.hbm %s6, %s1039
          %s1041 = sshll.u32 %s999, 4
          %s1042 = int_to_ptr.vmem [resolvable:$true] %s1041
          %1047 = dma.vmem_to_hbm [thread:$0]  %s1042, 4096, %s1040, %s996, 128, 128, 8
        $region60: #{tpu_custom_call.1} parent=35 // pred_fallthru
          _
      $region36: #{tpu_custom_call.1} parent=5 // pred_fallthru
        _
      %p1048 = scmp.le.s32.totalorder 2, %s25
      // Predicated region
      $region61: #{tpu_custom_call.1} parent=5 // pred_check
        %p1049 = pneg %p1048
      $region62: #{tpu_custom_call.1} parent=5 // pred_check_branch
        %1051 = sbr.rel (%p1049) target = $region64
      $region63: #{tpu_custom_call.1} parent=5 // pred_region
        %s1052 = ssub.s32 %s25, 2
        // Predicated region
        $region65: #{tpu_custom_call.1} parent=63 // pred_check
          %p1053 = pneg %p148
        $region66: #{tpu_custom_call.1} parent=63 // pred_check_branch
          %1055 = sbr.rel (%p1053) target = $region68
        $region67: #{tpu_custom_call.1} parent=63 // pred_region
          %s1056 = sand.u32 %s133, 1
          %s1057 = scalar_lea.sflag [#allocation4], %s1056
          %s1058 = sand.u32 %s133, 1
          %s1059 = smul.addr %s1058, 256
          %s1060 = scalar_lea.vmem [#allocation8], %s1059
          %1061 = dma.done %s1057, 4096
        $region68: #{tpu_custom_call.1} parent=63 // pred_fallthru
          _
        // Predicated region
        $region69: #{tpu_custom_call.1} parent=63 // pred_check
          %p1062 = pneg %p174
        $region70: #{tpu_custom_call.1} parent=63 // pred_check_branch
          %1064 = sbr.rel (%p1062) target = $region72
        $region71: #{tpu_custom_call.1} parent=63 // pred_region
          %s1065 = sand.u32 %s31, 1
          %s1066 = scalar_lea.sflag [#allocation10], %s1065
          %s1067 = sand.u32 %s159, 1
          %s1068 = smul.addr %s1067, 256
          %s1069 = scalar_lea.vmem [#allocation9], %s1068
          %1070 = dma.done %s1066, 4096
        $region72: #{tpu_custom_call.1} parent=63 // pred_fallthru
          _
        // Predicated region
        $region73: #{tpu_custom_call.1} parent=63 // pred_check
          %p1071 = pneg %p200
        $region74: #{tpu_custom_call.1} parent=63 // pred_check_branch
          %1073 = sbr.rel (%p1071) target = $region76
        $region75: #{tpu_custom_call.1} parent=63 // pred_region
          %s1074 = sand.u32 %s31, 1
          %s1075 = scalar_lea.sflag [#allocation10], %s1074
          %s1076 = sand.u32 %s185, 1
          %s1077 = smul.addr %s1076, 256
          %s1078 = scalar_lea.vmem [#allocation11], %s1077
          %1079 = dma.done %s1075, 4096
        $region76: #{tpu_custom_call.1} parent=63 // pred_fallthru
          _
      $region64: #{tpu_custom_call.1} parent=5 // pred_fallthru
        _
    $region6: #{tpu_custom_call.1} parent=1 // loop_footer
      %s29 = sadd.s32 1, %s25
    $region7: #{tpu_custom_call.1} parent=1 // loop_footer_branch
      %24 = sbr.rel target = $region3
    $region8: #{tpu_custom_call.1} parent=1 // loop_exit
      _
    %1080 = vsyncpa [#allocation3], 1
    %s1081 = scalar_lea.sflag [#allocation3], 1
    %1082 = vsyncpa %s1081, 1
    %1083 = vsyncpa [#allocation6], 1
    %s1084 = scalar_lea.sflag [#allocation6], 1
    %1085 = vsyncpa %s1084, 1
    %1086 = vsyncpa [#allocation4], 1
    %s1087 = scalar_lea.sflag [#allocation4], 1
    %1088 = vsyncpa %s1087, 1
    %1089 = vsyncpa [#allocation10], 1
    %s1090 = scalar_lea.sflag [#allocation10], 1
    %1091 = vsyncpa %s1090, 1

</llo_original>
